<compile_context>
chip_gen: v7x
topology: tpu7x:2x2x1
jax: 0.10.0
libtpu: 0.0.40
codegen_flags: <defaults>
</compile_context>

<pallas_src>
import jax
import jax.numpy as jnp
from jax import lax
from jax.experimental import pallas as pl
from jax.experimental.pallas import tpu as pltpu


# Double-buffered block budget: conservative for every generation (v5e default
# scoped limit is raised via vmem_limit_bytes; v7x only has 64 MiB physical).
_VMEM_BLOCK_BUDGET = 32 * 1024 * 1024


def _permute_linear_kernel(x_ref, wt_ref, b_ref, o_ref):
    """One grid step = full C contraction for one (batch-tile, S-tile, O-tile).

    x_ref : (bt, C, ts)   input tile in its native (B, C, S) layout
    wt_ref: (C, tn)       weight tile, pre-transposed once in the wrapper
    b_ref : (1, tn)       bias tile
    o_ref : (bt, ts, tn)  output tile (lane dim = O tile)
    """
    bt, ts, tn = o_ref.shape
    wt = wt_ref[...]                        # loaded once per grid step
    bias = b_ref[...].astype(jnp.float32)   # hoisted out of the batch loop

    def body(b, carry):
        xb = x_ref[b]                       # (C, ts)
        # Fused permute: contract over C (dim 0 of both operands) -> (ts, tn).
        # Any layout fixup Mosaic inserts stays on the small (C, ts) operand;
        # the store side remains canonical and lane-dense.
        yb = lax.dot_general(
            xb, wt,
            dimension_numbers=(((0,), (0,)), ((), ())),
            preferred_element_type=jnp.float32,
        )
        o_ref[b] = (yb + bias).astype(o_ref.dtype)
        return carry

    # fori_loop (not a static Python unroll) bounds the live range of the f32
    # result tile; unroll only when that tile comfortably fits in vregs.
    unroll = (ts * tn) <= 16 * 1024
    lax.fori_loop(0, bt, body, 0, unroll=unroll)


def _divisors_desc(n):
    return [d for d in range(n, 0, -1) if n % d == 0]


def permute_linear(x, weight, bias, *, block_b=None, block_s=None,
                   compute_dtype=None, force_pallas=False):
    """y[b, s, o] = sum_c x[b, c, s] * weight[o, c] + bias[o]."""
    B, C, S = x.shape
    O, C_w = weight.shape
    assert C == C_w, f"channel mismatch: {C} vs {C_w}"
    assert bias.shape == (O,)
    out_dtype = x.dtype

    # Tiny problems are pure pallas_call / grid-step overhead: let XLA fuse the
    # transpose into its own GEMM instead.
    if not force_pallas and (B * S * C * O) < (1 << 21):
        y = jnp.einsum("bcs,oc->bso", x, weight,
                       preferred_element_type=jnp.float32)
        return (y + bias.astype(jnp.float32)).astype(out_dtype)

    # ---- O tile -------------------------------------------------------------
    # tn = 256 fills the 256x256 MXU on v6e/v7x; partial tail blocks are handled
    # by Pallas masking (no weight padding, no post-kernel slice).  Only a tiny
    # O (< 128) is padded up to one lane-dense tile (and sliced off at the end).
    if O >= 256:
        o_pad, tn = O, 256
    elif O >= 128:
        o_pad, tn = O, 128
    else:
        o_pad, tn = 128, 128
    no = pl.cdiv(o_pad, tn)

    # Weight transposed ONCE here -> the MXU sees a canonical (K=C, N=tn) RHS.
    if o_pad == O:
        wt = weight.T                                   # (C, O)
        b2 = bias.reshape(1, O)
    else:
        wt = jnp.zeros((C, o_pad), weight.dtype).at[:, :O].set(weight.T)
        b2 = jnp.zeros((1, o_pad), bias.dtype).at[0, :O].set(bias)

    if compute_dtype is not None:                       # optional bf16 streaming
        x = x.astype(compute_dtype)
        wt = wt.astype(compute_dtype)

    x_bytes = x.dtype.itemsize
    w_bytes = wt.dtype.itemsize
    o_bytes = jnp.dtype(out_dtype).itemsize

    def vmem_need(bt_, ts_):                            # double-buffered blocks
        blk = (bt_ * C * ts_ * x_bytes + C * tn * w_bytes
               + tn * b2.dtype.itemsize + bt_ * ts_ * tn * o_bytes)
        return 2 * blk

    # ---- S tile (multiple of 128, or all of S) sized against the budget ------
    if block_s is not None:
        ts = block_s
    else:
        cand = ([S] if S <= 512 else []) + [c for c in (512, 384, 256, 128) if c < S]
        ts = cand[-1]
        for c in cand:
            if vmem_need(1, c) <= _VMEM_BLOCK_BUDGET:
                ts = c
                break
        # TODO(synk): if C ever gets large enough that even (1, C, 128) blocks
        # bust the budget, add a C grid axis with an f32 accumulator scratch.
    ns = pl.cdiv(S, ts)

    # ---- batch tile: largest divisor of B that still fits the budget ---------
    if block_b is not None:
        bt = block_b
    else:
        bt = 1
        for d in _divisors_desc(B):
            if vmem_need(d, ts) <= _VMEM_BLOCK_BUDGET:
                bt = d
                break
        # Keep >= 2 grid steps when possible so both v7x TensorCores get work.
        if B > 1 and bt == B and ns * no == 1:
            bt = next(d for d in _divisors_desc(B) if d < B)
    nb = pl.cdiv(B, bt)

    # ---- grid order: keep the operand with the larger refetch cost resident --
    # order A (O tile innermost): W^T refetched (nb*ns - 1) extra times
    # order B (O tile outermost): x    refetched (no - 1)     extra times
    extra_a = 0 if no == 1 else (nb * ns - 1) * no * C * tn * w_bytes
    extra_b = (no - 1) * nb * ns * bt * C * ts * x_bytes
    if extra_a <= extra_b:
        grid = (nb, ns, no)
        x_map = lambda bi, si, oi: (bi, 0, si)
        w_map = lambda bi, si, oi: (0, oi)
        o_map = lambda bi, si, oi: (bi, si, oi)
    else:
        grid = (no, nb, ns)
        x_map = lambda oi, bi, si: (bi, 0, si)
        w_map = lambda oi, bi, si: (0, oi)
        o_map = lambda oi, bi, si: (bi, si, oi)

    vmem_limit = int(min(64 * 1024 * 1024,
                         max(vmem_need(bt, ts) + 8 * 1024 * 1024,
                             32 * 1024 * 1024)))

    out = pl.pallas_call(
        _permute_linear_kernel,
        out_shape=jax.ShapeDtypeStruct((B, S, o_pad), out_dtype),
        grid_spec=pltpu.PrefetchScalarGridSpec(
            num_scalar_prefetch=0,
            grid=grid,
            in_specs=[
                pl.BlockSpec((bt, C, ts), x_map),   # x tile, native (B, C, S) layout
                pl.BlockSpec((C, tn), w_map),       # W^T tile
                pl.BlockSpec((1, tn), w_map),       # bias tile
            ],
            out_specs=pl.BlockSpec((bt, ts, tn), o_map),
        ),
        compiler_params=pltpu.CompilerParams(
            dimension_semantics=("parallel", "parallel", "parallel"),
            vmem_limit_bytes=vmem_limit,
        ),
    )(x, wt, b2)

    return out if o_pad == O else out[..., :O]


if __name__ == "__main__":
    key = jax.random.PRNGKey(0)
    k_x, k_w, k_b, k_x2 = jax.random.split(key, 4)

    # Model uses Linear(10, 10): the permuted last dim (original dim 1) is C=10.
    B, C, S, O = 2, 10, 8, 10
    x = jax.random.normal(k_x, (B, C, S), dtype=jnp.float32)
    weight = jax.random.normal(k_w, (O, C), dtype=jnp.float32) * 0.1
    bias = jax.random.normal(k_b, (O,), dtype=jnp.float32) * 0.1

    def reference(xv):
        y = jnp.einsum("bcs,oc->bso", xv, weight,
                       precision=jax.lax.Precision.HIGHEST,
                       preferred_element_type=jnp.float32)
        return y + bias[None, None, :]

    # Tolerance covers possible reduced-precision MXU passes on f32 inputs.
    TOL = dict(atol=5e-3, rtol=5e-3)

    # 1) Module-sized (tiny) shapes: force the Pallas path so the kernel itself
    #    is exercised; auto-dispatch would hand this to XLA.
    out = jax.block_until_ready(permute_linear(x, weight, bias, force_pallas=True))
    assert out.shape == (B, S, O), out.shape
    assert jnp.allclose(out, reference(x), **TOL), "pallas (small) mismatch"

    # 2) Auto-dispatch path (falls back to the fused XLA einsum at this size).
    out_fb = jax.block_until_ready(permute_linear(x, weight, bias))
    assert out_fb.shape == (B, S, O)
    assert jnp.allclose(out_fb, reference(x), **TOL), "fallback mismatch"

    # 3) A longer sequence: exercises the S-tiled, multi-step grid.
    B2, S2 = 2, 1024
    x2 = jax.random.normal(k_x2, (B2, C, S2), dtype=jnp.float32)
    out2 = jax.block_until_ready(permute_linear(x2, weight, bias, force_pallas=True))
    assert out2.shape == (B2, S2, O), out2.shape
    assert jnp.allclose(out2, reference(x2), **TOL), "pallas (tiled) mismatch"

    print("KERNEL_OK")
</pallas_src>

<mosaic_0001>
module attributes {stable_mosaic.version = 11 : i64} {
  func.func @_permute_linear_kernel(%arg0: i32, %arg1: i32, %arg2: i32, %arg3: memref<1x10x8xf32, #tpu.memory_space<vmem>>, %arg4: memref<10x128xf32, #tpu.memory_space<vmem>>, %arg5: memref<1x128xf32, #tpu.memory_space<vmem>>, %arg6: memref<1x8x128xf32, #tpu.memory_space<vmem>>) attributes {dimension_semantics = [#tpu.dimension_semantics<parallel>, #tpu.dimension_semantics<parallel>, #tpu.dimension_semantics<parallel>], iteration_bounds = array<i64: 2, 1, 1>, scalar_prefetch = 0 : i64, scratch_operands = 0 : i64, tpu.core_type = #tpu.core_type<tc>, window_params = [{transform_indices = @transform_0, window_bounds = array<i64: 1, 10, 8>}, {transform_indices = @transform_1, window_bounds = array<i64: 10, 128>}, {transform_indices = @transform_2, window_bounds = array<i64: 1, 128>}, {transform_indices = @transform_3, window_bounds = array<i64: 1, 8, 128>}]} {
    %c0 = arith.constant 0 : index
    %c0_0 = arith.constant 0 : index
    %0 = vector.load %arg4[%c0, %c0_0] : memref<10x128xf32, #tpu.memory_space<vmem>>, vector<10x128xf32>
    %c0_1 = arith.constant 0 : index
    %c0_2 = arith.constant 0 : index
    %1 = vector.load %arg5[%c0_1, %c0_2] : memref<1x128xf32, #tpu.memory_space<vmem>>, vector<1x128xf32>
    %c0_i32 = arith.constant 0 : i32
    %2 = arith.index_cast %c0_i32 : i32 to index
    %c0_3 = arith.constant 0 : index
    %c0_4 = arith.constant 0 : index
    %3 = vector.load %arg3[%2, %c0_3, %c0_4] : memref<1x10x8xf32, #tpu.memory_space<vmem>>, vector<1x10x8xf32>
    %4 = vector.shape_cast %3 : vector<1x10x8xf32> to vector<10x8xf32>
    %cst = arith.constant dense<0.000000e+00> : vector<8x128xf32>
    %5 = tpu.matmul %4, %0, %cst {dimension_numbers = #tpu.dot_dimension_numbers<[0], [0], [1], [1], [0, 1, 1, 1], [], []>} : vector<10x8xf32>, vector<10x128xf32>, vector<8x128xf32> -> vector<8x128xf32>
    %6 = vector.broadcast %1 : vector<1x128xf32> to vector<8x128xf32>
    %7 = arith.addf %5, %6 : vector<8x128xf32>
    %8 = arith.index_cast %c0_i32 : i32 to index
    %c0_5 = arith.constant 0 : index
    %c0_6 = arith.constant 0 : index
    %9 = vector.load %arg6[%8, %c0_5, %c0_6] : memref<1x8x128xf32, #tpu.memory_space<vmem>>, vector<1x8x128xf32>
    %10 = vector.shape_cast %9 : vector<1x8x128xf32> to vector<8x128xf32>
    %11 = vector.shape_cast %7 : vector<8x128xf32> to vector<1x8x128xf32>
    tpu.vector_store %arg6[%8, %c0_5, %c0_6], %11 {strides = array<i32>} : memref<1x8x128xf32, #tpu.memory_space<vmem>>, vector<1x8x128xf32>,
    %c1_i32 = arith.constant 1 : i32
    return
  }
  func.func @transform_0(%arg0: i32, %arg1: i32, %arg2: i32) -> (i32, i32, i32) {
    %c0_i32 = arith.constant 0 : i32
    %c0_i32_0 = arith.constant 0 : i32
    return %arg0, %c0_i32, %arg1 : i32, i32, i32
  }
  func.func @transform_1(%arg0: i32, %arg1: i32, %arg2: i32) -> (i32, i32) {
    %c0_i32 = arith.constant 0 : i32
    %c0_i32_0 = arith.constant 0 : i32
    return %c0_i32, %arg2 : i32, i32
  }
  func.func @transform_2(%arg0: i32, %arg1: i32, %arg2: i32) -> (i32, i32) {
    %c0_i32 = arith.constant 0 : i32
    %c0_i32_0 = arith.constant 0 : i32
    return %c0_i32, %arg2 : i32, i32
  }
  func.func @transform_3(%arg0: i32, %arg1: i32, %arg2: i32) -> (i32, i32, i32) {
    %c0_i32 = arith.constant 0 : i32
    return %arg0, %arg1, %arg2 : i32, i32, i32
  }
}

</mosaic_0001>

<llo_original>
// kernel: tpu_custom_call.1
$region0: #{tpu_custom_call.1}
  #allocation0 [shape = 'u32[]', space=smem, size = 0x4, offset = 0x4, fixed_abs, tag = 'smem constant byte address 0x4 - core index']
  #allocation1 [shape = 'u32[144,128]{1,0:T(1,128)}', space=vmem, size = 0x12000, scoped, tag = 'internal scratch']
  %s0 = inlined_call_operand.vmem [shape: f32[2,10,8], index: 0, kind: input, shape index: {}]
  %s1 = inlined_call_operand.vmem [shape: f32[10,128], index: 1, kind: input, shape index: {}]
  %s2 = inlined_call_operand.vmem [shape: f32[1,128], index: 2, kind: input, shape index: {}]
  %s3 = inlined_call_operand.hbm [shape: f32[2,8,128], index: 3, kind: output, shape index: {}]
  %s4 = sld [smem:[#allocation0]]
  $region45: #{tpu_custom_call.1} parent=0
    _
  %s6 = ssub.s32 1, %s4
  %s7 = scalar_select 0, %s6, %s4
  $region1: #{tpu_custom_call.1} parent=0
    #allocation2 [shape = 'u8[8192]{0}', space=vmem, size = 0x2000, scoped, tag = 'output window, operand 0']
    #allocation3 [shape = 's32[2]{0}', space=sflag, size = 0x8, scoped, tag = 'scoped memory for tpu_custom_call.1']
    %8 = vsyncpa [#allocation3], 0
    %s9 = scalar_lea.sflag [#allocation3], 1
    %10 = vsyncpa %s9, 0
    loop: start=0, step=1, limit=4
    $region2: #{tpu_custom_call.1} parent=1 // loop_pre_header
      _
    $region3: #{tpu_custom_call.1} parent=1 // loop_header
      %s12 = sphi 0, %s16
      %p13 = scmp.ge.s32.totalorder %s12, 4
      %s19 = sphi 0, %s38
      %s20 = sphi 0, %s34
      %s21 = sphi 0, %s30
      %s22 = sphi 0, %s19
      %s23 = sphi 0, %s20
      %s24 = sphi 0, %s21
      %s25 = sphi 0, %s22
      %s26 = sphi 0, %s23
      %s27 = sphi 0, %s24
      %s43 = sphi 0, %s45
      %s46 = sphi 0, %s43
      %s47 = sphi 0, %s46
      %s63 = sphi 0, %s47
      %s69 = sphi 0, %s71
      %s72 = sphi 0, %s69
      %s73 = sphi 0, %s72
      %s89 = sphi 0, %s73
      %s95 = sphi 0, %s97
      %s98 = sphi 0, %s95
      %s99 = sphi 0, %s98
      %s115 = sphi 0, %s99
      %s125 = sphi 0, %s127
      %s128 = sphi 0, %s125
      %s129 = sphi 0, %s128
      %s145 = sphi 0, %s129
    $region4: #{tpu_custom_call.1} parent=1 // loop_header_branch
      %15 = sbr.rel (%p13) target = $region8
    $region5: #{tpu_custom_call.1} parent=1 // loop_body
      %s17 = ssub.s32 %s12, 1
      %s18 = ssub.s32 %s12, 2
      %s28 = sadd.s32 1, %s21
      %p29 = scmp.ge.s32.totalorder %s28, 1
      %s30 = scalar_select %p29, 0, %s28
      %s31 = sadd.s32 1, %s20
      %s32 = scalar_select %p29, %s31, %s20
      %p33 = scmp.ge.s32.totalorder %s32, 1
      %s34 = scalar_select %p33, 0, %s32
      %s35 = sadd.s32 1, %s19
      %s36 = scalar_select %p33, %s35, %s19
      %p37 = scmp.ge.s32.totalorder %s36, 2
      %s38 = scalar_select %p37, 0, %s36
      %s39 = ssub.s32 %s19, %s38
      %s40 = ssub.s32 %s20, %s34
      %s41 = sor.u32 %s39, %s40
      %p42 = scmp.eq.s32.totalorder %s41, 0
      %s44 = sadd.s32 %s43, 1
      %s45 = scalar_select %p42, %s43, %s44
      %p48 = pneg %p42
      %p49 = scmp.eq.s32.totalorder %s12, 1
      %p50 = por %p48, %p49
      %p51 = scmp.ne.s32.totalorder %s43, %s46
      %p52 = scmp.eq.s32.totalorder %s12, 0
      %p53 = por %p51, %p52
      %p54 = scmp.ne.s32.totalorder %s43, %s46
      %p55 = scmp.eq.s32.totalorder %s17, 1
      %p56 = por %p54, %p55
      %p57 = scmp.ne.s32.totalorder %s46, %s47
      %p58 = scmp.eq.s32.totalorder %s17, 0
      %p59 = por %p57, %p58
      %p60 = scmp.ne.s32.totalorder %s46, %s47
      %p61 = scmp.eq.s32.totalorder %s18, 1
      %p62 = por %p60, %p61
      %p64 = scmp.ne.s32.totalorder %s47, %s63
      %p65 = scmp.eq.s32.totalorder %s18, 0
      %p66 = por %p64, %p65
      %s67 = ssub.s32 %s21, %s30
      %p68 = scmp.eq.s32.totalorder %s67, 0
      %s70 = sadd.s32 %s69, 1
      %s71 = scalar_select %p68, %s69, %s70
      %p74 = pneg %p68
      %p75 = scmp.eq.s32.totalorder %s12, 1
      %p76 = por %p74, %p75
      %p77 = scmp.ne.s32.totalorder %s69, %s72
      %p78 = scmp.eq.s32.totalorder %s12, 0
      %p79 = por %p77, %p78
      %p80 = scmp.ne.s32.totalorder %s69, %s72
      %p81 = scmp.eq.s32.totalorder %s17, 1
      %p82 = por %p80, %p81
      %p83 = scmp.ne.s32.totalorder %s72, %s73
      %p84 = scmp.eq.s32.totalorder %s17, 0
      %p85 = por %p83, %p84
      %p86 = scmp.ne.s32.totalorder %s72, %s73
      %p87 = scmp.eq.s32.totalorder %s18, 1
      %p88 = por %p86, %p87
      %p90 = scmp.ne.s32.totalorder %s73, %s89
      %p91 = scmp.eq.s32.totalorder %s18, 0
      %p92 = por %p90, %p91
      %s93 = ssub.s32 %s21, %s30
      %p94 = scmp.eq.s32.totalorder %s93, 0
      %s96 = sadd.s32 %s95, 1
      %s97 = scalar_select %p94, %s95, %s96
      %p100 = pneg %p94
      %p101 = scmp.eq.s32.totalorder %s12, 1
      %p102 = por %p100, %p101
      %p103 = scmp.ne.s32.totalorder %s95, %s98
      %p104 = scmp.eq.s32.totalorder %s12, 0
      %p105 = por %p103, %p104
      %p106 = scmp.ne.s32.totalorder %s95, %s98
      %p107 = scmp.eq.s32.totalorder %s17, 1
      %p108 = por %p106, %p107
      %p109 = scmp.ne.s32.totalorder %s98, %s99
      %p110 = scmp.eq.s32.totalorder %s17, 0
      %p111 = por %p109, %p110
      %p112 = scmp.ne.s32.totalorder %s98, %s99
      %p113 = scmp.eq.s32.totalorder %s18, 1
      %p114 = por %p112, %p113
      %p116 = scmp.ne.s32.totalorder %s99, %s115
      %p117 = scmp.eq.s32.totalorder %s18, 0
      %p118 = por %p116, %p117
      %s119 = ssub.s32 %s19, %s38
      %s120 = ssub.s32 %s20, %s34
      %s121 = sor.u32 %s119, %s120
      %s122 = ssub.s32 %s21, %s30
      %s123 = sor.u32 %s121, %s122
      %p124 = scmp.eq.s32.totalorder %s123, 0
      %s126 = sadd.s32 %s125, 1
      %s127 = scalar_select %p124, %s125, %s126
      %p130 = pneg %p124
      %p131 = scmp.eq.s32.totalorder %s12, 1
      %p132 = por %p130, %p131
      %p133 = scmp.ne.s32.totalorder %s125, %s128
      %p134 = scmp.eq.s32.totalorder %s12, 0
      %p135 = por %p133, %p134
      %p136 = scmp.ne.s32.totalorder %s125, %s128
      %p137 = scmp.eq.s32.totalorder %s17, 1
      %p138 = por %p136, %p137
      %p139 = scmp.ne.s32.totalorder %s128, %s129
      %p140 = scmp.eq.s32.totalorder %s17, 0
      %p141 = por %p139, %p140
      %p142 = scmp.ne.s32.totalorder %s128, %s129
      %p143 = scmp.eq.s32.totalorder %s18, 1
      %p144 = por %p142, %p143
      %p146 = scmp.ne.s32.totalorder %s129, %s145
      %p147 = scmp.eq.s32.totalorder %s18, 0
      %p148 = por %p146, %p147
      %p149 = scmp.le.s32.totalorder 1, %s12
      %p150 = scmp.lt.s32.totalorder %s12, 3
      %p151 = pnand %p149, %p150
      %p152 = pneg %p151
      // Predicated region
      $region9: #{tpu_custom_call.1} parent=5 // pred_check
        _
      $region10: #{tpu_custom_call.1} parent=5 // pred_check_branch
        %154 = sbr.rel (%p151) target = $region12
      $region11: #{tpu_custom_call.1} parent=5 // pred_region
        %s155 = ssub.s32 %s12, 1
        // Predicated region
        $region13: #{tpu_custom_call.1} parent=11 // pred_check
          %p156 = pneg %p85
        $region14: #{tpu_custom_call.1} parent=11 // pred_check_branch
          %158 = sbr.rel (%p156) target = $region16
        $region15: #{tpu_custom_call.1} parent=11 // pred_region
          %p159 = scmp.lt.s32.totalorder %s24, 0
          %s160 = scalar_select %p159, %s24, 0
          %s161 = smul.addr %s160, 8
          %s162 = scalar_lea.vmem %s1, %s161
        $region16: #{tpu_custom_call.1} parent=11 // pred_fallthru
          _
        // Predicated region
        $region17: #{tpu_custom_call.1} parent=11 // pred_check
          %p163 = pneg %p111
        $region18: #{tpu_custom_call.1} parent=11 // pred_check_branch
          %165 = sbr.rel (%p163) target = $region20
        $region19: #{tpu_custom_call.1} parent=11 // pred_region
          %p166 = scmp.lt.s32.totalorder %s24, 0
          %s167 = scalar_select %p166, %s24, 0
          %s168 = scalar_lea.vmem %s2, %s167
        $region20: #{tpu_custom_call.1} parent=11 // pred_fallthru
          _
      $region12: #{tpu_custom_call.1} parent=5 // pred_fallthru
        _
      %p169 = scmp.lt.s32.totalorder %s12, 2
      // Predicated region
      $region21: #{tpu_custom_call.1} parent=5 // pred_check
        %p170 = pneg %p169
      $region22: #{tpu_custom_call.1} parent=5 // pred_check_branch
        %172 = sbr.rel (%p170) target = $region24
      $region23: #{tpu_custom_call.1} parent=5 // pred_region
        // Predicated region
        $region25: #{tpu_custom_call.1} parent=23 // pred_check
          %p173 = pneg %p53
        $region26: #{tpu_custom_call.1} parent=23 // pred_check_branch
          %175 = sbr.rel (%p173) target = $region28
        $region27: #{tpu_custom_call.1} parent=23 // pred_region
          %p176 = scmp.lt.s32.totalorder %s19, 1
          %s177 = scalar_select %p176, %s19, 1
          %p178 = scmp.lt.s32.totalorder %s20, 0
          %s179 = scalar_select %p178, %s20, 0
          %s180 = smul.addr %s177, 2
          %s181 = sadd.s32 %s179, %s180
          %s182 = smul.addr %s181, 8
          %s183 = scalar_lea.vmem %s0, %s182
        $region28: #{tpu_custom_call.1} parent=23 // pred_fallthru
          _
      $region24: #{tpu_custom_call.1} parent=5 // pred_fallthru
        _
      %p184 = scmp.le.s32.totalorder 1, %s12
      %p185 = scmp.lt.s32.totalorder %s12, 3
      %p186 = pnand %p184, %p185
      %p187 = pneg %p186
      // Predicated region
      $region29: #{tpu_custom_call.1} parent=5 // pred_check
        _
      $region30: #{tpu_custom_call.1} parent=5 // pred_check_branch
        %189 = sbr.rel (%p186) target = $region32
      $region31: #{tpu_custom_call.1} parent=5 // pred_region
        %s190 = ssub.s32 %s12, 1
        %p191 = scmp.lt.s32.totalorder %s22, 1
        %s192 = scalar_select %p191, %s22, 1
        %p193 = scmp.lt.s32.totalorder %s23, 0
        %s194 = scalar_select %p193, %s23, 0
        %s195 = smul.addr %s192, 2
        %s196 = sadd.s32 %s194, %s195
        %s197 = smul.addr %s196, 8
        %s198 = scalar_lea.vmem %s0, %s197
        %p199 = pneg %p59
        %p200 = pneg %p56
        %p201 = scmp.lt.s32.totalorder %s24, 0
        %s202 = scalar_select %p201, %s24, 0
        %s203 = smul.addr %s202, 8
        %s204 = scalar_lea.vmem %s1, %s203
        %p205 = pneg %p85
        %p206 = pneg %p82
        %p207 = scmp.lt.s32.totalorder %s24, 0
        %s208 = scalar_select %p207, %s24, 0
        %s209 = scalar_lea.vmem %s2, %s208
        %p210 = pneg %p111
        %p211 = pneg %p108
        %p212 = pneg %p141
        %p213 = pneg %p138
        %s214 = sand.u32 %s128, 1
        %s215 = scalar_lea.sflag [#allocation3], %s214
        %s216 = sand.u32 %s128, 1
        %s217 = smul.addr %s216, 8
        %s218 = scalar_lea.vmem [#allocation2], %s217
        %p219 = scmp.lt.s32.totalorder %s22, 1
        %s220 = scalar_select %p219, %s22, 1
        %p221 = scmp.lt.s32.totalorder %s23, 0
        %s222 = scalar_select %p221, %s23, 0
        %s223 = smul.addr %s220, 2
        %s224 = sadd.s32 %s222, %s223
        %s225 = smul.addr %s224, 8
        %s226 = scalar_lea.vmem %s0, %s225
        %p227 = scmp.lt.s32.totalorder %s24, 0
        %s228 = scalar_select %p227, %s24, 0
        %s229 = smul.addr %s228, 8
        %s230 = scalar_lea.vmem %s1, %s229
        %p231 = scmp.lt.s32.totalorder %s24, 0
        %s232 = scalar_select %p231, %s24, 0
        %s233 = scalar_lea.vmem %s2, %s232
        %v234 = vld [vmem:[%s230] sm:$0xff]
        %v235 = vld [vmem:[%s230 + $0x8] sm:$0x3]
        %v236 = vld [vmem:[%s233] sm:$0x1]
        %v237 = vld [vmem:[%s226] sm:$0xff]
        %v238 = vld [vmem:[%s226 + $0x8] sm:$0x3]
        %v240 = vlaneseq
        %v241 = vshrl.u32 %v240, 7
        %v242 = vsub.s32 0, %v241
        %v243 = vrot.slane %v236, %v242
        %245 = vxpose.xlu0.b32.start [1/16] %v237, 128
        %246 = vxpose.xlu0.b32.cont [2/16] %v238, 128
        %247 = vxpose.xlu0.b32.cont [3/16] 0.0, 128
        %248 = vxpose.xlu0.b32.cont [4/16] 0.0, 128
        %249 = vxpose.xlu0.b32.cont [5/16] 0.0, 128
        %250 = vxpose.xlu0.b32.cont [6/16] 0.0, 128
        %251 = vxpose.xlu0.b32.cont [7/16] 0.0, 128
        %252 = vxpose.xlu0.b32.cont [8/16] 0.0, 128
        %253 = vxpose.xlu0.b32.cont [9/16] 0.0, 128
        %254 = vxpose.xlu0.b32.cont [10/16] 0.0, 128
        %255 = vxpose.xlu0.b32.cont [11/16] 0.0, 128
        %256 = vxpose.xlu0.b32.cont [12/16] 0.0, 128
        %257 = vxpose.xlu0.b32.cont [13/16] 0.0, 128
        %258 = vxpose.xlu0.b32.cont [14/16] 0.0, 128
        %259 = vxpose.xlu0.b32.cont [15/16] 0.0, 128
        %260 = vxpose.xlu0.b32.end [16/16] 0.0, 128
        %v261 = vpop.trf.xlu0
        %v262 = vpop.trf.xlu0
        %v263 = vpop.trf.xlu0
        %v264 = vpop.trf.xlu0
        %v265 = vpop.trf.xlu0
        %v266 = vpop.trf.xlu0
        %v267 = vpop.trf.xlu0
        %v268 = vpop.trf.xlu0
        %v269 = vpop.trf.xlu0
        %v270 = vpop.trf.xlu0
        %v271 = vpop.trf.xlu0
        %v272 = vpop.trf.xlu0
        %v273 = vpop.trf.xlu0
        %v274 = vpop.trf.xlu0
        %v275 = vpop.trf.xlu0
        %v276 = vpop.trf.xlu0
        %vm277 = vcmask 80896
        %v279 = vsel %vm277, %v261, 0
        %vm281 = vcmask 1041408
        %v283 = vsel %vm281, %v235, 0
        %285 = vmatprep.subr.mxu0 0.0
        %286 = vmatpush1.msra.mxu0 %v234
        %287 = vmatprep.subr.mxu0 0.0
        %288 = vmatpush1.msra.mxu0 %v283
        %289 = vmatprep.subr.mxu0 0.0
        %290 = vmatpush1.msra.mxu0 0.0
        %291 = vmatprep.subr.mxu0 0.0
        %292 = vmatpush1.msra.mxu0 0.0
        %293 = vmatprep.subr.mxu0 0.0
        %294 = vmatpush1.msra.mxu0 0.0
        %295 = vmatprep.subr.mxu0 0.0
        %296 = vmatpush1.msra.mxu0 0.0
        %297 = vmatprep.subr.mxu0 0.0
        %298 = vmatpush1.msra.mxu0 0.0
        %299 = vmatprep.subr.mxu0 0.0
        %300 = vmatpush1.msra.mxu0 0.0
        %301 = vmatprep.subr.mxu0 0.0
        %302 = vmatpush1.msra.mxu0 0.0
        %303 = vmatprep.subr.mxu0 0.0
        %304 = vmatpush1.msra.mxu0 0.0
        %305 = vmatprep.subr.mxu0 0.0
        %306 = vmatpush1.msra.mxu0 0.0
        %307 = vmatprep.subr.mxu0 0.0
        %308 = vmatpush1.msra.mxu0 0.0
        %309 = vmatprep.subr.mxu0 0.0
        %310 = vmatpush1.msra.mxu0 0.0
        %311 = vmatprep.subr.mxu0 0.0
        %312 = vmatpush1.msra.mxu0 0.0
        %313 = vmatprep.subr.mxu0 0.0
        %314 = vmatpush1.msra.mxu0 0.0
        %315 = vmatprep.subr.mxu0 0.0
        %316 = vmatpush1.msra.mxu0 0.0
        %317 = vmatprep.subr.mxu0 0.0
        %318 = vmatpush1.msra.mxu0 0.0
        %319 = vmatprep.subr.mxu0 0.0
        %320 = vmatpush1.msra.mxu0 0.0
        %321 = vmatprep.subr.mxu0 0.0
        %322 = vmatpush1.msra.mxu0 0.0
        %323 = vmatprep.subr.mxu0 0.0
        %324 = vmatpush1.msra.mxu0 0.0
        %325 = vmatprep.subr.mxu0 0.0
        %326 = vmatpush1.msra.mxu0 0.0
        %327 = vmatprep.subr.mxu0 0.0
        %328 = vmatpush1.msra.mxu0 0.0
        %329 = vmatprep.subr.mxu0 0.0
        %330 = vmatpush1.msra.mxu0 0.0
        %331 = vmatprep.subr.mxu0 0.0
        %332 = vmatpush1.msra.mxu0 0.0
        %333 = vmatprep.subr.mxu0 0.0
        %334 = vmatpush1.msra.mxu0 0.0
        %335 = vmatprep.subr.mxu0 0.0
        %336 = vmatpush1.msra.mxu0 0.0
        %337 = vmatprep.subr.mxu0 0.0
        %338 = vmatpush1.msra.mxu0 0.0
        %339 = vmatprep.subr.mxu0 0.0
        %340 = vmatpush1.msra.mxu0 0.0
        %341 = vmatprep.subr.mxu0 0.0
        %342 = vmatpush1.msra.mxu0 0.0
        %343 = vmatprep.subr.mxu0 0.0
        %344 = vmatpush1.msra.mxu0 0.0
        %345 = vmatprep.subr.mxu0 0.0
        %346 = vmatpush1.msra.mxu0 0.0
        %347 = vmatprep.subr.mxu0 0.0
        %348 = vmatpush1.msra.mxu0 0.0
        %349 = vmatprep.mubr.f32.mxu0 0.0
        %350 = vmatmul.mubr.f32.gmra.mrb[0].mxu0 %v279
        %v351 = vpop.f32.mrb[0].mxu0
        %v352 = vadd.f32 %v243, %v351
        %v353 = vpop.f32.mrb[0].mxu0
        %354 = vdwg.mxu0
        %355 = vst [vmem:[%s218] sm:$0xff] %v352
        %s356 = sand.u32 %s128, 1
        %s357 = scalar_lea.sflag [#allocation3], %s356
        %s358 = sand.u32 %s128, 1
        %s359 = smul.addr %s358, 8
        %s360 = scalar_lea.vmem [#allocation2], %s359
        // Predicated region
        $region33: #{tpu_custom_call.1} parent=31 // pred_check
          %p361 = pneg %p138
        $region34: #{tpu_custom_call.1} parent=31 // pred_check_branch
          %363 = sbr.rel (%p361) target = $region36
        $region35: #{tpu_custom_call.1} parent=31 // pred_region
          %s365 = ssub.s32 128, 128
          %366 = vsyncadd %s357, %s365
          %s367 = sadd.s32 %s24, %s23
          %s368 = sadd.s32 %s367, %s22
          %s369 = smul.addr %s368, 128
          %s370 = scalar_lea.hbm %s3, %s369
          %s372 = sshll.u32 %s360, 4
          %s373 = int_to_ptr.vmem [resolvable:$true] %s372
          %375 = dma.vmem_to_hbm [thread:$0]  %s373, 128, %s370, %s357
        $region36: #{tpu_custom_call.1} parent=31 // pred_fallthru
          _
      $region32: #{tpu_custom_call.1} parent=5 // pred_fallthru
        _
      %p376 = scmp.le.s32.totalorder 2, %s12
      // Predicated region
      $region37: #{tpu_custom_call.1} parent=5 // pred_check
        %p377 = pneg %p376
      $region38: #{tpu_custom_call.1} parent=5 // pred_check_branch
        %379 = sbr.rel (%p377) target = $region40
      $region39: #{tpu_custom_call.1} parent=5 // pred_region
        %s380 = ssub.s32 %s12, 2
        // Predicated region
        $region41: #{tpu_custom_call.1} parent=39 // pred_check
          %p381 = pneg %p144
        $region42: #{tpu_custom_call.1} parent=39 // pred_check_branch
          %383 = sbr.rel (%p381) target = $region44
        $region43: #{tpu_custom_call.1} parent=39 // pred_region
          %s384 = sand.u32 %s129, 1
          %s385 = scalar_lea.sflag [#allocation3], %s384
          %s386 = sand.u32 %s129, 1
          %s387 = smul.addr %s386, 8
          %s388 = scalar_lea.vmem [#allocation2], %s387
          %389 = dma.done %s385, 128
        $region44: #{tpu_custom_call.1} parent=39 // pred_fallthru
          _
      $region40: #{tpu_custom_call.1} parent=5 // pred_fallthru
        _
    $region6: #{tpu_custom_call.1} parent=1 // loop_footer
      %s16 = sadd.s32 1, %s12
    $region7: #{tpu_custom_call.1} parent=1 // loop_footer_branch
      %11 = sbr.rel target = $region3
    $region8: #{tpu_custom_call.1} parent=1 // loop_exit
      _
    %390 = vsyncpa [#allocation3], 1
    %s391 = scalar_lea.sflag [#allocation3], 1
    %392 = vsyncpa %s391, 1

</llo_original>
